<compile_context>
chip_gen: v5e
topology: v5e:2x2
jax: 0.10.0
libtpu: 0.0.40
codegen_flags: <defaults>
</compile_context>

<pallas_src>
import functools

import jax
import jax.numpy as jnp
from jax.experimental import pallas as pl
from jax.experimental.pallas import tpu as pltpu


def _scale_shift_kernel(x_ref, wt_ref, b_ref, out_ref):
    # x_ref:   (TB, F)   activation tile (ragged last tile is masked by Pallas)
    # wt_ref:  (F, 2C)   pre-transposed weight, constant across the grid
    # b_ref:   (1, 2C)   bias, constant across the grid
    # out_ref: (TB, 2C)  single lane-dense output (split into scale/shift in wrapper)
    x = x_ref[...]

    # SiLU in f32 (v5e has no bf16 VPU/EUP); cast to the matmul operand dtype
    # afterwards so the MXU operands are not force-upcast.
    x_f32 = x.astype(jnp.float32)
    silu = (x_f32 * jax.nn.sigmoid(x_f32)).astype(wt_ref.dtype)

    # (TB, F) @ (F, 2C) -> (TB, 2C); K is on the RHS sublane axis so the weight
    # needs no per-step XLU transpose.  f32 accumulation on the MXU.
    y = jnp.dot(silu, wt_ref[...], preferred_element_type=jnp.float32)
    y = y + b_ref[...].astype(jnp.float32)

    out_ref[...] = y.astype(out_ref.dtype)


def _choose_batch_tile(batch, features, itemsize):
    """Pick the number of x rows per grid step."""
    # ~8 MiB per x buffer => <=16 MiB once double-buffered; safe on v5e's 16 MiB
    # default scoped VMEM and far under v7x's 64 MiB physical VMEM.
    vmem_rows = max(8, (8 * 1024 * 1024) // max(1, features * itemsize))
    cap = 1024 if features <= 512 else 512  # bigger tiles when rows are narrow
    tb = min(cap, vmem_rows)
    # Keep >= 2 grid steps for mid/large batches so the "parallel" batch axis can
    # shard across both TensorCores on v7x (and pipeline on v5e/v6e).
    if batch > 256:
        half = ((batch + 1) // 2 + 7) // 8 * 8
        tb = min(tb, max(128, half))
    if tb >= batch:
        return batch                  # one full-extent block: always layout-legal
    return max(8, (tb // 8) * 8)      # tiled blocks need sublane-multiple rows


@functools.partial(jax.jit, static_argnames=("channels", "mxu_dtype"))
def mapping_to_scale_shift(mapping, weight, bias, channels, mxu_dtype=None):
    """
    mapping: (B, F)
    weight:  (2C, F)  -- PyTorch nn.Linear layout (out_features, in_features)
    bias:    (2C,)
    Returns (scale, shift), each of shape (B, C, 1).
    """
    B, F = mapping.shape
    out_dim = weight.shape[0]
    assert out_dim == 2 * channels
    assert bias.shape == (out_dim,)

    op_dtype = jnp.dtype(mxu_dtype) if mxu_dtype is not None else mapping.dtype
    # One tiny up-front transpose (2C*F elements) so the MXU sees an (F, 2C) RHS
    # instead of re-transposing the weight tile through the XLU every grid step.
    wt = weight.T.astype(op_dtype)       # (F, 2C)
    b2d = bias.reshape(1, out_dim)       # (1, 2C)

    itemsize = jnp.dtype(mapping.dtype).itemsize
    tb = _choose_batch_tile(B, F, itemsize)
    grid_b = pl.cdiv(B, tb)              # ragged last tile is masked; any B works

    # VMEM working set: double-buffered x tile, double-buffered output tile,
    # (possibly double-buffered) weight, bias.
    vmem_need = (
        2 * tb * F * itemsize
        + 2 * tb * out_dim * itemsize
        + 2 * F * out_dim * jnp.dtype(op_dtype).itemsize
        + 4 * out_dim
    )
    compiler_kwargs = dict(dimension_semantics=("parallel",))
    if vmem_need > 12 * 1024 * 1024:
        # v5e's default scoped VMEM is only 16 MiB; budget explicitly for big tiles,
        # capped below v7x's 64 MiB physical VMEM.
        compiler_kwargs["vmem_limit_bytes"] = int(
            min(56 * 1024 * 1024, vmem_need * 3 // 2 + (1 << 20))
        )

    cost = pl.CostEstimate(
        flops=2 * B * F * out_dim,
        transcendentals=B * F,
        bytes_accessed=(
            itemsize * (B * F + B * out_dim)
            + jnp.dtype(op_dtype).itemsize * F * out_dim
            + 4 * out_dim
        ),
    )

    y = pl.pallas_call(
        _scale_shift_kernel,
        out_shape=jax.ShapeDtypeStruct((B, out_dim), mapping.dtype),
        grid=(grid_b,),
        in_specs=[
            pl.BlockSpec((tb, F), lambda i: (i, 0)),          # x, pipelined over batch
            pl.BlockSpec((F, out_dim), lambda i: (0, 0)),     # weight, VMEM-resident
            pl.BlockSpec((1, out_dim), lambda i: (0, 0)),     # bias, VMEM-resident
        ],
        out_specs=pl.BlockSpec((tb, out_dim), lambda i: (i, 0)),  # lane-dense 2C output
        compiler_params=pltpu.CompilerParams(**compiler_kwargs),
        cost_estimate=cost,
    )(mapping, wt, b2d)

    # rearrange 'b c -> b c 1' + chunk(2, dim=1), done on the full-width output.
    return y[:, :channels, None], y[:, channels:, None]


def _reference(mapping, weight, bias, channels):
    silu = mapping * jax.nn.sigmoid(mapping)
    y = jnp.dot(silu, weight.T, precision=jax.lax.Precision.HIGHEST) + bias
    return y[:, :channels, None], y[:, channels:, None]


if __name__ == "__main__":
    # --- Small test matching the module spec: batch=2, features=32, channels=4 ---
    B, features, channels = 2, 32, 4
    k1, k2, k3 = jax.random.split(jax.random.PRNGKey(0), 3)
    mapping = jax.random.normal(k1, (B, features), dtype=jnp.float32)
    bound = 1.0 / (features ** 0.5)
    weight = jax.random.uniform(k2, (channels * 2, features),
                                minval=-bound, maxval=bound, dtype=jnp.float32)
    bias = jax.random.uniform(k3, (channels * 2,),
                              minval=-bound, maxval=bound, dtype=jnp.float32)

    scale, shift = mapping_to_scale_shift(mapping, weight, bias, channels)
    jax.block_until_ready((scale, shift))

    ref_scale, ref_shift = _reference(mapping, weight, bias, channels)
    assert scale.shape == (B, channels, 1) and shift.shape == (B, channels, 1)
    assert jnp.allclose(scale, ref_scale, atol=1e-5)
    assert jnp.allclose(shift, ref_shift, atol=1e-5)

    # --- Larger, non-multiple batch: exercises the tiled grid + ragged last tile ---
    B2, F2, C2 = 1000, 256, 64
    k4, k5, k6 = jax.random.split(jax.random.PRNGKey(1), 3)
    mapping2 = jax.random.normal(k4, (B2, F2), dtype=jnp.float32)
    bound2 = 1.0 / (F2 ** 0.5)
    weight2 = jax.random.uniform(k5, (C2 * 2, F2),
                                 minval=-bound2, maxval=bound2, dtype=jnp.float32)
    bias2 = jax.random.uniform(k6, (C2 * 2,),
                               minval=-bound2, maxval=bound2, dtype=jnp.float32)

    scale2, shift2 = mapping_to_scale_shift(mapping2, weight2, bias2, C2)
    jax.block_until_ready((scale2, shift2))

    ref_scale2, ref_shift2 = _reference(mapping2, weight2, bias2, C2)
    assert scale2.shape == (B2, C2, 1) and shift2.shape == (B2, C2, 1)
    assert jnp.allclose(scale2, ref_scale2, atol=5e-4)
    assert jnp.allclose(shift2, ref_shift2, atol=5e-4)

    print("KERNEL_OK")
</pallas_src>

<mosaic_0001>
module attributes {stable_mosaic.version = 11 : i64} {
  func.func @_scale_shift_kernel(%arg0: i32, %arg1: memref<2x32xf32, #tpu.memory_space<vmem>>, %arg2: memref<32x8xf32, #tpu.memory_space<vmem>>, %arg3: memref<1x8xf32, #tpu.memory_space<vmem>>, %arg4: memref<2x8xf32, #tpu.memory_space<vmem>>) attributes {dimension_semantics = [#tpu.dimension_semantics<parallel>], iteration_bounds = array<i64: 1>, scalar_prefetch = 0 : i64, scratch_operands = 0 : i64, tpu.core_type = #tpu.core_type<tc>, window_params = [{transform_indices = @transform_0, window_bounds = array<i64: 2, 32>}, {pipeline_mode = #tpu.pipeline_mode<synchronous>, transform_indices = @transform_1, window_bounds = array<i64: 32, 8>}, {pipeline_mode = #tpu.pipeline_mode<synchronous>, transform_indices = @transform_2, window_bounds = array<i64: 1, 8>}, {transform_indices = @transform_3, window_bounds = array<i64: 2, 8>}]} {
    %c0 = arith.constant 0 : index
    %c0_0 = arith.constant 0 : index
    %0 = vector.load %arg1[%c0, %c0_0] : memref<2x32xf32, #tpu.memory_space<vmem>>, vector<2x32xf32>
    %1 = arith.negf %0 : vector<2x32xf32>
    %2 = math.exp %1 : vector<2x32xf32>
    %cst = arith.constant 1.000000e+00 : f32
    %3 = vector.broadcast %cst : f32 to vector<2x32xf32>
    %4 = arith.addf %3, %2 : vector<2x32xf32>
    %5 = arith.divf %3, %4 : vector<2x32xf32>
    %6 = arith.mulf %0, %5 : vector<2x32xf32>
    %c0_1 = arith.constant 0 : index
    %c0_2 = arith.constant 0 : index
    %7 = vector.load %arg2[%c0_1, %c0_2] : memref<32x8xf32, #tpu.memory_space<vmem>>, vector<32x8xf32>
    %cst_3 = arith.constant dense<0.000000e+00> : vector<2x8xf32>
    %8 = tpu.matmul %6, %7, %cst_3 {dimension_numbers = #tpu.dot_dimension_numbers<[1], [0], [0], [1], [0, 0, 1, 1], [], []>} : vector<2x32xf32>, vector<32x8xf32>, vector<2x8xf32> -> vector<2x8xf32>
    %c0_4 = arith.constant 0 : index
    %c0_5 = arith.constant 0 : index
    %9 = vector.load %arg3[%c0_4, %c0_5] : memref<1x8xf32, #tpu.memory_space<vmem>>, vector<1x8xf32>
    %10 = vector.broadcast %9 : vector<1x8xf32> to vector<2x8xf32>
    %11 = arith.addf %8, %10 : vector<2x8xf32>
    %c0_6 = arith.constant 0 : index
    %c0_7 = arith.constant 0 : index
    %12 = vector.load %arg4[%c0_6, %c0_7] : memref<2x8xf32, #tpu.memory_space<vmem>>, vector<2x8xf32>
    tpu.vector_store %arg4[%c0_6, %c0_7], %11 {strides = array<i32>} : memref<2x8xf32, #tpu.memory_space<vmem>>, vector<2x8xf32>,
    return
  }
  func.func @transform_0(%arg0: i32) -> (i32, i32) {
    %c0_i32 = arith.constant 0 : i32
    %c0_i32_0 = arith.constant 0 : i32
    return %arg0, %c0_i32 : i32, i32
  }
  func.func @transform_1(%arg0: i32) -> (i32, i32) {
    %c0_i32 = arith.constant 0 : i32
    %c0_i32_0 = arith.constant 0 : i32
    %c0_i32_1 = arith.constant 0 : i32
    return %c0_i32, %c0_i32_0 : i32, i32
  }
  func.func @transform_2(%arg0: i32) -> (i32, i32) {
    %c0_i32 = arith.constant 0 : i32
    %c0_i32_0 = arith.constant 0 : i32
    %c0_i32_1 = arith.constant 0 : i32
    return %c0_i32, %c0_i32_0 : i32, i32
  }
  func.func @transform_3(%arg0: i32) -> (i32, i32) {
    %c0_i32 = arith.constant 0 : i32
    %c0_i32_0 = arith.constant 0 : i32
    return %arg0, %c0_i32 : i32, i32
  }
}

</mosaic_0001>

<llo_original>
// kernel: mapping_to_scale_shift.1
$region0: #{mapping_to_scale_shift.1}
  #allocation0 [shape = 'u32[]', space=smem, size = 0x4, offset = 0x4, fixed_abs, tag = 'smem constant byte address 0x4 - core index']
  #allocation1 [shape = 'u32[72,128]{1,0:T(1,128)}', space=vmem, size = 0x9000, scoped, tag = 'internal scratch']
  %s0 = inlined_call_operand.vmem [shape: f32[2,32], index: 0, kind: input, shape index: {}]
  %s1 = inlined_call_operand.vmem [shape: f32[32,8], index: 1, kind: input, shape index: {}]
  %s2 = inlined_call_operand.vmem [shape: f32[1,8], index: 2, kind: input, shape index: {}]
  %s3 = inlined_call_operand.vmem [shape: f32[2,8], index: 3, kind: output, shape index: {}]
  %s4 = sld [smem:[#allocation0]]
  $region22: #{mapping_to_scale_shift.1} parent=0
    _
  %s6 = ssub.s32 1, %s4
  %s7 = scalar_select 0, %s6, %s4
  // Predicated region
  $region2: #{mapping_to_scale_shift.1} parent=0 // pred_check
    _
  $region3: #{mapping_to_scale_shift.1} parent=0 // pred_check_branch
    %9 = sbr.rel (0) target = $region5
  $region4: #{mapping_to_scale_shift.1} parent=0 // pred_region
    _
  $region5: #{mapping_to_scale_shift.1} parent=0 // pred_fallthru
    _
  // Predicated region
  $region6: #{mapping_to_scale_shift.1} parent=0 // pred_check
    _
  $region7: #{mapping_to_scale_shift.1} parent=0 // pred_check_branch
    %11 = sbr.rel (0) target = $region9
  $region8: #{mapping_to_scale_shift.1} parent=0 // pred_region
    _
  $region9: #{mapping_to_scale_shift.1} parent=0 // pred_fallthru
    _
  // Predicated region
  $region10: #{mapping_to_scale_shift.1} parent=0 // pred_check
    _
  $region11: #{mapping_to_scale_shift.1} parent=0 // pred_check_branch
    %13 = sbr.rel (0) target = $region13
  $region12: #{mapping_to_scale_shift.1} parent=0 // pred_region
    _
  $region13: #{mapping_to_scale_shift.1} parent=0 // pred_fallthru
    _
  %v14 = vld [vmem:[%s0] sm:$0x3]
  %v15 = vxor.u32 %v14, 2147483648
  %v16 = vmul.f32 %v15, 1.442695
  %v17 = vpow.pop %v16
  %v18 = vadd.f32 %v17, 1.0
  %v19 = vrcp.pop %v18
  %v20 = vmul.f32 %v18, %v19
  %v21 = vsub.f32 1.0, %v20
  %v22 = vmul.f32 %v19, %v21
  %v23 = vadd.f32 %v19, %v22
  %vm24 = vweird.f32 %v18
  %vm25 = vweird.f32 %v19
  %vm26 = vmor %vm24, %vm25
  %v27 = vsel %vm26, %v19, %v23
  %v28 = vand.u32 2147483647, %v18
  %vm29 = vcmp.eq.f32.partialorder %v28, 8.507059e+37
  %v30 = vand.u32 %v18, 2147483648
  %v31 = vor.u32 1.1754944e-38, %v30
  %v32 = vsel %vm29, %v31, %v27
  %v33 = vmul.f32 1.0, %v32
  %v34 = vmul.f32 %v14, %v33
  %v35 = vld [vmem:[%s1] sm:$0xff]
  %v36 = vld [vmem:[%s1 + $0x8] sm:$0xff]
  %v37 = vld [vmem:[%s1 + $0x10] sm:$0xff]
  %v38 = vld [vmem:[%s1 + $0x18] sm:$0xff]
  %v39 = vld [vmem:[%s2] sm:$0x1]
  %v41 = vperm.slane %v39, 0
  %vm43 = vcmask 261120
  %v45 = vsel %vm43, %v34, 0
  %47 = vmatpush.msra.mxu0 0.0
  %48 = vmatpush.msra.mxu0 0.0
  %49 = vmatpush.msra.mxu0 0.0
  %50 = vmatpush.msra.mxu0 0.0
  %51 = vmatpush.msra.mxu0 0.0
  %52 = vmatpush.msra.mxu0 0.0
  %53 = vmatpush.msra.mxu0 0.0
  %54 = vmatpush.msra.mxu0 0.0
  %55 = vmatpush.msra.mxu0 0.0
  %56 = vmatpush.msra.mxu0 0.0
  %57 = vmatpush.msra.mxu0 0.0
  %58 = vmatpush.msra.mxu0 0.0
  %59 = vmatpush.msra.mxu0 %v38
  %60 = vmatpush.msra.mxu0 %v37
  %61 = vmatpush.msra.mxu0 %v36
  %62 = vmatpush.msra.mxu0 %v35
  %63 = vmatmul.f32.gmra.mxu0 %v45
  %v64 = vpop.f32.mrf.mxu0
  %v65 = vadd.f32 %v41, %v64
  %66 = vdwg.mxu0
  %vm67 = vcmask 58368
  %68 = vst.msk [vmem:[%s3] sm:$0x3] %vm67, %v65
  // Predicated region
  $region14: #{mapping_to_scale_shift.1} parent=0 // pred_check
    _
  $region15: #{mapping_to_scale_shift.1} parent=0 // pred_check_branch
    %70 = sbr.rel (0) target = $region17
  $region16: #{mapping_to_scale_shift.1} parent=0 // pred_region
    _
  $region17: #{mapping_to_scale_shift.1} parent=0 // pred_fallthru
    _
  // Predicated region
  $region18: #{mapping_to_scale_shift.1} parent=0 // pred_check
    _
  $region19: #{mapping_to_scale_shift.1} parent=0 // pred_check_branch
    %72 = sbr.rel (0) target = $region21
  $region20: #{mapping_to_scale_shift.1} parent=0 // pred_region
    _
  $region21: #{mapping_to_scale_shift.1} parent=0 // pred_fallthru
    _

</llo_original>
